<compile_context>
chip_gen: v7x
topology: tpu7x:2x2x1
jax: 0.10.0
libtpu: 0.0.40
codegen_flags: <defaults>
</compile_context>

<pallas_src>
import jax
import jax.numpy as jnp
from jax.experimental import pallas as pl
from jax.experimental.pallas import tpu as pltpu


# ------------------------------ fused Pallas kernel ------------------------------

def _fused_loss_kernel(targets_ref,                       # SMEM (N,) int32 (prefetch)
                       feat_p_ref, grad_p_ref,            # (1, C, HW), (1, C, 1)
                       feat_d_ref, grad_d_ref,            # (1, C, HW), (1, C, 1)
                       logits_ref,                        # (1, 1, K)
                       cam_ref, nll_ref):                 # (1, 1, 1), (1, 1, 1)
    """Per-image Grad-CAM log-diff + per-sample cross-entropy NLL.

    One grid step == one image / one sample.  All math stays in f32 (v5e has no
    bf16 VPU/EUP path); heatmap math is VPU broadcast-multiply + XLU reductions,
    normalization reciprocal goes to the EUP.
    """
    i = pl.program_id(0)

    def _heatmap(feat_ref, grad_ref):
        feat = feat_ref[0]                         # (C, HW) lane-dense
        g = grad_ref[0]                            # (C, 1) -> broadcast along lanes
        weighted = feat * g                        # features[c] *= pooled_grads[c]
        c = feat.shape[0]
        hm = jnp.sum(weighted, axis=0, keepdims=True) * (1.0 / c)   # mean over C -> (1, HW)
        hm = jnp.maximum(hm, 0.0)                  # np.maximum(heatmap, 0)
        mx = jnp.max(hm, axis=-1, keepdims=True)   # (1, 1)
        # heatmap /= np.max(heatmap): divide on EUP via approx reciprocal
        return hm * pl.reciprocal(mx, approx=True)

    hm_p = _heatmap(feat_p_ref, grad_p_ref)
    hm_d = _heatmap(feat_d_ref, grad_d_ref)
    diff = jnp.sum(jnp.abs(hm_p - hm_d))           # abs(ped_CAM - ds_CAM).sum()
    cam_ref[...] = jnp.broadcast_to(jnp.log(diff), (1, 1, 1))

    # per-sample cross-entropy (torch.nn.CrossEntropyLoss numerics, mean taken outside)
    logits = logits_ref[0]                         # (1, K)
    m = jnp.max(logits, axis=-1, keepdims=True)
    shifted = logits - m
    lse = jnp.log(jnp.sum(jnp.exp(shifted), axis=-1, keepdims=True))
    logp = shifted - lse                           # (1, K)
    t = targets_ref[i]                             # scalar target from SMEM
    col = jax.lax.broadcasted_iota(jnp.int32, logp.shape, 1)
    nll = -jnp.sum(jnp.where(col == t, logp, 0.0))
    nll_ref[...] = jnp.broadcast_to(nll, (1, 1, 1))


def fused_cam_ce(targets, feats_p, grads_p, feats_d, grads_d, logits):
    """One pallas_call for the whole batch: grid=(N,), per-image outputs."""
    n, c, hw = feats_p.shape
    k = logits.shape[-1]
    logits3 = logits.reshape(n, 1, k).astype(jnp.float32)

    cam, nll = pl.pallas_call(
        _fused_loss_kernel,
        out_shape=(jax.ShapeDtypeStruct((n, 1, 1), jnp.float32),
                   jax.ShapeDtypeStruct((n, 1, 1), jnp.float32)),
        grid_spec=pltpu.PrefetchScalarGridSpec(
            num_scalar_prefetch=1,                 # targets land in SMEM
            grid=(n,),
            in_specs=[
                pl.BlockSpec((1, c, hw), lambda i, tgt: (i, 0, 0)),
                pl.BlockSpec((1, c, 1), lambda i, tgt: (i, 0, 0)),
                pl.BlockSpec((1, c, hw), lambda i, tgt: (i, 0, 0)),
                pl.BlockSpec((1, c, 1), lambda i, tgt: (i, 0, 0)),
                pl.BlockSpec((1, 1, k), lambda i, tgt: (i, 0, 0)),
            ],
            out_specs=(
                pl.BlockSpec((1, 1, 1), lambda i, tgt: (i, 0, 0)),
                pl.BlockSpec((1, 1, 1), lambda i, tgt: (i, 0, 0)),
            ),
        ),
        compiler_params=pltpu.CompilerParams(
            dimension_semantics=("parallel",)),    # image axis shards across TCs (v7x)
    )(targets.astype(jnp.int32),
      feats_p.astype(jnp.float32), grads_p.astype(jnp.float32),
      feats_d.astype(jnp.float32), grads_d.astype(jnp.float32),
      logits3)
    return cam.reshape(n), nll.reshape(n)


# ----------------------- synthetic model glue (plain JAX) -----------------------

def _make_model_params(key, in_ch, feat_ch, num_classes):
    k1, k2, k3 = jax.random.split(key, 3)
    # nonnegative weights keep the Grad-CAM heatmaps well-defined (max > 0)
    conv_w = jnp.abs(jax.random.normal(k1, (feat_ch, in_ch, 3, 3), jnp.float32)) * 0.1
    conv_b = jnp.full((feat_ch,), 0.1, jnp.float32)
    fc_w = jnp.abs(jax.random.normal(k2, (num_classes, feat_ch), jnp.float32)) * 0.5
    fc_b = jax.random.normal(k3, (num_classes,), jnp.float32) * 0.01
    return dict(conv_w=conv_w, conv_b=conv_b, fc_w=fc_w, fc_b=fc_b)


def _features_front(x, params):
    # model.features up to and including the visual layer '40':
    # conv3x3 (SAME) + relu + 2x2 avg-pool, NCHW.
    y = jax.lax.conv_general_dilated(
        x, params["conv_w"], window_strides=(1, 1), padding="SAME",
        dimension_numbers=("NCHW", "OIHW", "NCHW"))
    y = y + params["conv_b"][None, :, None, None]
    y = jax.nn.relu(y)
    n, c, h, w = y.shape
    return y.reshape(n, c, h // 2, 2, w // 2, 2).mean(axis=(3, 5))


def _head(feats, params):
    # remaining 'features' modules (global avg-pool) + flatten + classifier
    ff = jnp.mean(feats, axis=(2, 3))                 # (1, Cf)
    return ff @ params["fc_w"].T + params["fc_b"]     # (1, K)


def _grad_cam_pieces(image, params):
    """Forward to the visual layer, grad of the argmax logit wrt those features.

    Returns lane-dense (C, H*W) features and (C, 1) pooled gradients so the
    vmapped batch stacks directly into the fused kernel's input layout.
    """
    feats = _features_front(image[None], params)      # (1, Cf, Hf, Wf)
    out = _head(feats, params)
    pred = jnp.argmax(out, axis=1)[0]
    # TODO(synk): torch.autograd.grad through an external VGG-style model has no
    # in-kernel equivalent; reproduced with jax.grad over this synthetic model.
    grads = jax.grad(lambda f: _head(f, params)[0, pred])(feats)
    pooled = jnp.mean(grads, axis=(2, 3))             # adaptive_avg_pool2d -> (1, Cf)
    cf, hf, wf = feats.shape[1], feats.shape[2], feats.shape[3]
    return feats[0].reshape(cf, hf * wf), pooled[0].reshape(cf, 1)


# ------------------------------- test_loss.forward -------------------------------

@jax.jit
def test_loss_forward(preds, targets, images, ped_params, ds_params):
    # vmap the Grad-CAM glue over the batch (replaces the per-image Python loop)
    fp, gp = jax.vmap(_grad_cam_pieces, in_axes=(0, None))(images, ped_params)
    fd, gd = jax.vmap(_grad_cam_pieces, in_axes=(0, None))(images, ds_params)
    # one fused pallas_call: per-image CAM log-diff + per-sample CE NLL
    cam_logs, nlls = fused_cam_ce(targets, fp, gp, fd, gd, preds)
    cam_loss = 0.1 * jnp.sum(cam_logs)                # sum of log(|diff|.sum()) * 0.1
    ped_loss_val = jnp.mean(nlls)                     # CrossEntropyLoss (mean reduction)
    return cam_loss + ped_loss_val


if __name__ == "__main__":
    key = jax.random.PRNGKey(0)
    k_img, k_pred, k_tgt, k_ped, k_ds = jax.random.split(key, 5)

    batch, in_ch, hw = 2, 3, 16
    feat_ch, num_classes = 8, 5

    images = jax.random.normal(k_img, (batch, in_ch, hw, hw), jnp.float32)
    preds = jax.random.normal(k_pred, (batch, num_classes), jnp.float32)
    targets = jax.random.randint(k_tgt, (batch,), 0, num_classes)

    ped_params = _make_model_params(k_ped, in_ch, feat_ch, num_classes)
    ds_params = _make_model_params(k_ds, in_ch, feat_ch, num_classes)

    total = test_loss_forward(preds, targets, images, ped_params, ds_params)
    total = jax.block_until_ready(total)
    assert jnp.isfinite(total), f"non-finite loss: {total}"
    print("KERNEL_OK")
</pallas_src>

<mosaic_0001>
module attributes {stable_mosaic.version = 11 : i64} {
  func.func @_fused_loss_kernel(%arg0: i32, %arg1: memref<2xi32, #tpu.memory_space<smem>>, %arg2: memref<1x8x64xf32, #tpu.memory_space<vmem>>, %arg3: memref<1x8x1xf32, #tpu.memory_space<vmem>>, %arg4: memref<1x8x64xf32, #tpu.memory_space<vmem>>, %arg5: memref<1x8x1xf32, #tpu.memory_space<vmem>>, %arg6: memref<1x1x5xf32, #tpu.memory_space<vmem>>, %arg7: memref<1x1x1xf32, #tpu.memory_space<vmem>>, %arg8: memref<1x1x1xf32, #tpu.memory_space<vmem>>) attributes {dimension_semantics = [#tpu.dimension_semantics<parallel>], iteration_bounds = array<i64: 2>, scalar_prefetch = 1 : i64, scratch_operands = 0 : i64, tpu.core_type = #tpu.core_type<tc>, window_params = [{transform_indices = @transform_0, window_bounds = array<i64: 1, 8, 64>}, {transform_indices = @transform_1, window_bounds = array<i64: 1, 8, 1>}, {transform_indices = @transform_2, window_bounds = array<i64: 1, 8, 64>}, {transform_indices = @transform_3, window_bounds = array<i64: 1, 8, 1>}, {transform_indices = @transform_4, window_bounds = array<i64: 1, 1, 5>}, {transform_indices = @transform_5, window_bounds = array<i64: 1, 1, 1>}, {transform_indices = @transform_6, window_bounds = array<i64: 1, 1, 1>}]} {
    %c0 = arith.constant 0 : index
    %c0_0 = arith.constant 0 : index
    %c0_1 = arith.constant 0 : index
    %0 = vector.load %arg2[%c0, %c0_0, %c0_1] : memref<1x8x64xf32, #tpu.memory_space<vmem>>, vector<1x8x64xf32>
    %1 = vector.shape_cast %0 : vector<1x8x64xf32> to vector<8x64xf32>
    %c0_2 = arith.constant 0 : index
    %c0_3 = arith.constant 0 : index
    %c0_4 = arith.constant 0 : index
    %2 = vector.load %arg3[%c0_2, %c0_3, %c0_4] : memref<1x8x1xf32, #tpu.memory_space<vmem>>, vector<1x8x1xf32>
    %3 = vector.shape_cast %2 : vector<1x8x1xf32> to vector<8x1xf32>
    %4 = vector.broadcast %3 : vector<8x1xf32> to vector<8x64xf32>
    %5 = arith.mulf %1, %4 : vector<8x64xf32>
    %cst = arith.constant dense<0.000000e+00> : vector<64xf32>
    %6 = vector.multi_reduction <add>, %5, %cst [0] : vector<8x64xf32> to vector<64xf32>
    %7 = vector.shape_cast %6 : vector<64xf32> to vector<1x64xf32>
    %cst_5 = arith.constant 1.250000e-01 : f32
    %8 = vector.broadcast %cst_5 : f32 to vector<1x64xf32>
    %9 = arith.mulf %7, %8 : vector<1x64xf32>
    %cst_6 = arith.constant 0.000000e+00 : f32
    %10 = vector.broadcast %cst_6 : f32 to vector<1x64xf32>
    %11 = arith.maximumf %9, %10 : vector<1x64xf32>
    %cst_7 = arith.constant dense<0xFF800000> : vector<1xf32>
    %12 = vector.multi_reduction <maximumf>, %11, %cst_7 [1] : vector<1x64xf32> to vector<1xf32>
    %13 = vector.shape_cast %12 : vector<1xf32> to vector<1x1xf32>
    %14 = tpu.reciprocal %13 {approx = true} : vector<1x1xf32> -> vector<1x1xf32>
    %15 = vector.broadcast %14 : vector<1x1xf32> to vector<1x64xf32>
    %16 = arith.mulf %11, %15 : vector<1x64xf32>
    %c0_8 = arith.constant 0 : index
    %c0_9 = arith.constant 0 : index
    %c0_10 = arith.constant 0 : index
    %17 = vector.load %arg4[%c0_8, %c0_9, %c0_10] : memref<1x8x64xf32, #tpu.memory_space<vmem>>, vector<1x8x64xf32>
    %18 = vector.shape_cast %17 : vector<1x8x64xf32> to vector<8x64xf32>
    %c0_11 = arith.constant 0 : index
    %c0_12 = arith.constant 0 : index
    %c0_13 = arith.constant 0 : index
    %19 = vector.load %arg5[%c0_11, %c0_12, %c0_13] : memref<1x8x1xf32, #tpu.memory_space<vmem>>, vector<1x8x1xf32>
    %20 = vector.shape_cast %19 : vector<1x8x1xf32> to vector<8x1xf32>
    %21 = vector.broadcast %20 : vector<8x1xf32> to vector<8x64xf32>
    %22 = arith.mulf %18, %21 : vector<8x64xf32>
    %cst_14 = arith.constant dense<0.000000e+00> : vector<64xf32>
    %23 = vector.multi_reduction <add>, %22, %cst_14 [0] : vector<8x64xf32> to vector<64xf32>
    %24 = vector.shape_cast %23 : vector<64xf32> to vector<1x64xf32>
    %cst_15 = arith.constant 1.250000e-01 : f32
    %25 = vector.broadcast %cst_15 : f32 to vector<1x64xf32>
    %26 = arith.mulf %24, %25 : vector<1x64xf32>
    %cst_16 = arith.constant 0.000000e+00 : f32
    %27 = vector.broadcast %cst_16 : f32 to vector<1x64xf32>
    %28 = arith.maximumf %26, %27 : vector<1x64xf32>
    %cst_17 = arith.constant dense<0xFF800000> : vector<1xf32>
    %29 = vector.multi_reduction <maximumf>, %28, %cst_17 [1] : vector<1x64xf32> to vector<1xf32>
    %30 = vector.shape_cast %29 : vector<1xf32> to vector<1x1xf32>
    %31 = tpu.reciprocal %30 {approx = true} : vector<1x1xf32> -> vector<1x1xf32>
    %32 = vector.broadcast %31 : vector<1x1xf32> to vector<1x64xf32>
    %33 = arith.mulf %28, %32 : vector<1x64xf32>
    %34 = arith.subf %16, %33 : vector<1x64xf32>
    %35 = math.absf %34 : vector<1x64xf32>
    %36 = vector.shape_cast %35 : vector<1x64xf32> to vector<1x1x64xf32>
    %cst_18 = arith.constant dense<0.000000e+00> : vector<1xf32>
    %37 = vector.multi_reduction <add>, %36, %cst_18 [1, 2] : vector<1x1x64xf32> to vector<1xf32>
    %38 = vector.shape_cast %37 : vector<1xf32> to vector<1x1x1xf32>
    %39 = vector.extract %38[0, 0, 0] : f32 from vector<1x1x1xf32>
    %40 = math.log %39 : f32
    %41 = vector.broadcast %40 : f32 to vector<1x1x1xf32>
    %c0_19 = arith.constant 0 : index
    %c0_20 = arith.constant 0 : index
    %c0_21 = arith.constant 0 : index
    %42 = vector.load %arg7[%c0_19, %c0_20, %c0_21] : memref<1x1x1xf32, #tpu.memory_space<vmem>>, vector<1x1x1xf32>
    tpu.vector_store %arg7[%c0_19, %c0_20, %c0_21], %41 {strides = array<i32>} : memref<1x1x1xf32, #tpu.memory_space<vmem>>, vector<1x1x1xf32>,
    %c0_22 = arith.constant 0 : index
    %c0_23 = arith.constant 0 : index
    %c0_24 = arith.constant 0 : index
    %43 = vector.load %arg6[%c0_22, %c0_23, %c0_24] : memref<1x1x5xf32, #tpu.memory_space<vmem>>, vector<1x1x5xf32>
    %44 = vector.shape_cast %43 : vector<1x1x5xf32> to vector<1x5xf32>
    %cst_25 = arith.constant dense<0xFF800000> : vector<1xf32>
    %45 = vector.multi_reduction <maximumf>, %44, %cst_25 [1] : vector<1x5xf32> to vector<1xf32>
    %46 = vector.shape_cast %45 : vector<1xf32> to vector<1x1xf32>
    %47 = vector.broadcast %46 : vector<1x1xf32> to vector<1x5xf32>
    %48 = arith.subf %44, %47 : vector<1x5xf32>
    %49 = math.exp %48 : vector<1x5xf32>
    %cst_26 = arith.constant dense<0.000000e+00> : vector<1xf32>
    %50 = vector.multi_reduction <add>, %49, %cst_26 [1] : vector<1x5xf32> to vector<1xf32>
    %51 = vector.shape_cast %50 : vector<1xf32> to vector<1x1xf32>
    %52 = math.log %51 : vector<1x1xf32>
    %53 = vector.broadcast %52 : vector<1x1xf32> to vector<1x5xf32>
    %54 = arith.subf %48, %53 : vector<1x5xf32>
    %55 = arith.index_cast %arg0 : i32 to index
    %56 = memref.load %arg1[%55] : memref<2xi32, #tpu.memory_space<smem>>
    %57 = tpu.iota {dimensions = array<i32: 1>} : vector<1x5xi32>
    %58 = vector.broadcast %56 : i32 to vector<1x5xi32>
    %59 = arith.cmpi eq, %57, %58 : vector<1x5xi32>
    %cst_27 = arith.constant 0.000000e+00 : f32
    %60 = vector.broadcast %cst_27 : f32 to vector<1x5xf32>
    %61 = arith.select %59, %54, %60 : vector<1x5xi1>, vector<1x5xf32>
    %62 = vector.shape_cast %61 : vector<1x5xf32> to vector<1x1x5xf32>
    %cst_28 = arith.constant dense<0.000000e+00> : vector<1xf32>
    %63 = vector.multi_reduction <add>, %62, %cst_28 [1, 2] : vector<1x1x5xf32> to vector<1xf32>
    %64 = vector.shape_cast %63 : vector<1xf32> to vector<1x1x1xf32>
    %65 = vector.extract %64[0, 0, 0] : f32 from vector<1x1x1xf32>
    %cst_29 = arith.constant 0.000000e+00 : f32
    %66 = arith.subf %cst_29, %65 : f32
    %67 = vector.broadcast %66 : f32 to vector<1x1x1xf32>
    %c0_30 = arith.constant 0 : index
    %c0_31 = arith.constant 0 : index
    %c0_32 = arith.constant 0 : index
    %68 = vector.load %arg8[%c0_30, %c0_31, %c0_32] : memref<1x1x1xf32, #tpu.memory_space<vmem>>, vector<1x1x1xf32>
    tpu.vector_store %arg8[%c0_30, %c0_31, %c0_32], %67 {strides = array<i32>} : memref<1x1x1xf32, #tpu.memory_space<vmem>>, vector<1x1x1xf32>,
    return
  }
  func.func @transform_0(%arg0: i32, %arg1: memref<2xi32, #tpu.memory_space<smem>>) -> (i32, i32, i32) {
    %c0_i32 = arith.constant 0 : i32
    %c0_i32_0 = arith.constant 0 : i32
    %c0_i32_1 = arith.constant 0 : i32
    return %arg0, %c0_i32, %c0_i32_0 : i32, i32, i32
  }
  func.func @transform_1(%arg0: i32, %arg1: memref<2xi32, #tpu.memory_space<smem>>) -> (i32, i32, i32) {
    %c0_i32 = arith.constant 0 : i32
    %c0_i32_0 = arith.constant 0 : i32
    %c0_i32_1 = arith.constant 0 : i32
    return %arg0, %c0_i32, %c0_i32_0 : i32, i32, i32
  }
  func.func @transform_2(%arg0: i32, %arg1: memref<2xi32, #tpu.memory_space<smem>>) -> (i32, i32, i32) {
    %c0_i32 = arith.constant 0 : i32
    %c0_i32_0 = arith.constant 0 : i32
    %c0_i32_1 = arith.constant 0 : i32
    return %arg0, %c0_i32, %c0_i32_0 : i32, i32, i32
  }
  func.func @transform_3(%arg0: i32, %arg1: memref<2xi32, #tpu.memory_space<smem>>) -> (i32, i32, i32) {
    %c0_i32 = arith.constant 0 : i32
    %c0_i32_0 = arith.constant 0 : i32
    %c0_i32_1 = arith.constant 0 : i32
    return %arg0, %c0_i32, %c0_i32_0 : i32, i32, i32
  }
  func.func @transform_4(%arg0: i32, %arg1: memref<2xi32, #tpu.memory_space<smem>>) -> (i32, i32, i32) {
    %c0_i32 = arith.constant 0 : i32
    %c0_i32_0 = arith.constant 0 : i32
    %c0_i32_1 = arith.constant 0 : i32
    return %arg0, %c0_i32, %c0_i32_0 : i32, i32, i32
  }
  func.func @transform_5(%arg0: i32, %arg1: memref<2xi32, #tpu.memory_space<smem>>) -> (i32, i32, i32) {
    %c0_i32 = arith.constant 0 : i32
    %c0_i32_0 = arith.constant 0 : i32
    %c0_i32_1 = arith.constant 0 : i32
    return %arg0, %c0_i32, %c0_i32_0 : i32, i32, i32
  }
  func.func @transform_6(%arg0: i32, %arg1: memref<2xi32, #tpu.memory_space<smem>>) -> (i32, i32, i32) {
    %c0_i32 = arith.constant 0 : i32
    %c0_i32_0 = arith.constant 0 : i32
    %c0_i32_1 = arith.constant 0 : i32
    return %arg0, %c0_i32, %c0_i32_0 : i32, i32, i32
  }
}

</mosaic_0001>

<llo_original>
// kernel: test_loss_forward.1
$region0: #{test_loss_forward.1}
  #allocation0 [shape = 'u32[]', space=smem, size = 0x4, offset = 0x4, fixed_abs, tag = 'smem constant byte address 0x4 - core index']
  #allocation1 [shape = 'u32[144,128]{1,0:T(1,128)}', space=vmem, size = 0x12000, scoped, tag = 'internal scratch']
  #allocation2 [shape = 's32[1]{0}', space=sflag, size = 0x4, scoped, tag = 'scoped memory for test_loss_forward.1']
  #allocation3 [shape = 'u8[512]{0}', space=smem, size = 0x200, scoped, tag = 'prefetched SMEM operand 0']
  %s0 = inlined_call_operand.vmem [shape: s32[2], index: 0, kind: input, shape index: {}]
  %s1 = inlined_call_operand.vmem [shape: f32[2,8,64], index: 1, kind: input, shape index: {}]
  %s2 = inlined_call_operand.vmem [shape: f32[2,8,1], index: 2, kind: input, shape index: {}]
  %s3 = inlined_call_operand.vmem [shape: f32[2,8,64], index: 3, kind: input, shape index: {}]
  %s4 = inlined_call_operand.vmem [shape: f32[2,8,1], index: 4, kind: input, shape index: {}]
  %s5 = inlined_call_operand.vmem [shape: f32[2,1,5], index: 5, kind: input, shape index: {}]
  %s6 = inlined_call_operand.vmem [shape: f32[2,1,1], index: 6, kind: output, shape index: {0}]
  %s7 = inlined_call_operand.vmem [shape: f32[2,1,1], index: 7, kind: output, shape index: {1}]
  %8 = xla_tuple %s6, %s7
  %s9 = sld [smem:[#allocation0]]
  $region61: #{test_loss_forward.1} parent=0
    _
  %s11 = ssub.s32 1, %s9
  %s12 = scalar_select 0, %s11, %s9
  %s13 = sshll.u32 %s0, 4
  %s14 = int_to_ptr.vmem [resolvable:$true] %s13
  %16 = dma.vmem_to_smem %s14, 16, [#allocation3], [#allocation2]
  %17 = dma.done [#allocation2], 16
  %18 = sfence
  loop: start=0, step=1, limit=4
  $region2: #{test_loss_forward.1} parent=0 // loop_pre_header
    _
  $region3: #{test_loss_forward.1} parent=0 // loop_header
    %s20 = sphi 0, %s24
    %p21 = scmp.ge.s32.totalorder %s20, 4
    %s30 = sphi 0, %s32
    %s33 = sphi 0, %s30
    %s34 = sphi 0, %s33
    %s50 = sphi 0, %s34
    %s56 = sphi 0, %s58
    %s59 = sphi 0, %s56
    %s60 = sphi 0, %s59
    %s76 = sphi 0, %s60
    %s82 = sphi 0, %s84
    %s85 = sphi 0, %s82
    %s86 = sphi 0, %s85
    %s102 = sphi 0, %s86
    %s108 = sphi 0, %s110
    %s111 = sphi 0, %s108
    %s112 = sphi 0, %s111
    %s128 = sphi 0, %s112
    %s134 = sphi 0, %s136
    %s137 = sphi 0, %s134
    %s138 = sphi 0, %s137
    %s154 = sphi 0, %s138
    %s160 = sphi 0, %s162
    %s163 = sphi 0, %s160
    %s164 = sphi 0, %s163
    %s180 = sphi 0, %s164
    %s186 = sphi 0, %s188
    %s189 = sphi 0, %s186
    %s190 = sphi 0, %s189
    %s206 = sphi 0, %s190
  $region4: #{test_loss_forward.1} parent=0 // loop_header_branch
    %23 = sbr.rel (%p21) target = $region8
  $region5: #{test_loss_forward.1} parent=0 // loop_body
    %s25 = ssub.s32 %s20, 1
    %s26 = ssub.s32 %s20, 2
    %s27 = sadd.s32 %s20, 1
    %s28 = ssub.s32 %s20, %s27
    %p29 = scmp.eq.s32.totalorder %s28, 0
    %s31 = sadd.s32 %s30, 1
    %s32 = scalar_select %p29, %s30, %s31
    %p35 = pneg %p29
    %p36 = scmp.eq.s32.totalorder %s20, 1
    %p37 = por %p35, %p36
    %p38 = scmp.ne.s32.totalorder %s30, %s33
    %p39 = scmp.eq.s32.totalorder %s20, 0
    %p40 = por %p38, %p39
    %p41 = scmp.ne.s32.totalorder %s30, %s33
    %p42 = scmp.eq.s32.totalorder %s25, 1
    %p43 = por %p41, %p42
    %p44 = scmp.ne.s32.totalorder %s33, %s34
    %p45 = scmp.eq.s32.totalorder %s25, 0
    %p46 = por %p44, %p45
    %p47 = scmp.ne.s32.totalorder %s33, %s34
    %p48 = scmp.eq.s32.totalorder %s26, 1
    %p49 = por %p47, %p48
    %p51 = scmp.ne.s32.totalorder %s34, %s50
    %p52 = scmp.eq.s32.totalorder %s26, 0
    %p53 = por %p51, %p52
    %s54 = ssub.s32 %s20, %s27
    %p55 = scmp.eq.s32.totalorder %s54, 0
    %s57 = sadd.s32 %s56, 1
    %s58 = scalar_select %p55, %s56, %s57
    %p61 = pneg %p55
    %p62 = scmp.eq.s32.totalorder %s20, 1
    %p63 = por %p61, %p62
    %p64 = scmp.ne.s32.totalorder %s56, %s59
    %p65 = scmp.eq.s32.totalorder %s20, 0
    %p66 = por %p64, %p65
    %p67 = scmp.ne.s32.totalorder %s56, %s59
    %p68 = scmp.eq.s32.totalorder %s25, 1
    %p69 = por %p67, %p68
    %p70 = scmp.ne.s32.totalorder %s59, %s60
    %p71 = scmp.eq.s32.totalorder %s25, 0
    %p72 = por %p70, %p71
    %p73 = scmp.ne.s32.totalorder %s59, %s60
    %p74 = scmp.eq.s32.totalorder %s26, 1
    %p75 = por %p73, %p74
    %p77 = scmp.ne.s32.totalorder %s60, %s76
    %p78 = scmp.eq.s32.totalorder %s26, 0
    %p79 = por %p77, %p78
    %s80 = ssub.s32 %s20, %s27
    %p81 = scmp.eq.s32.totalorder %s80, 0
    %s83 = sadd.s32 %s82, 1
    %s84 = scalar_select %p81, %s82, %s83
    %p87 = pneg %p81
    %p88 = scmp.eq.s32.totalorder %s20, 1
    %p89 = por %p87, %p88
    %p90 = scmp.ne.s32.totalorder %s82, %s85
    %p91 = scmp.eq.s32.totalorder %s20, 0
    %p92 = por %p90, %p91
    %p93 = scmp.ne.s32.totalorder %s82, %s85
    %p94 = scmp.eq.s32.totalorder %s25, 1
    %p95 = por %p93, %p94
    %p96 = scmp.ne.s32.totalorder %s85, %s86
    %p97 = scmp.eq.s32.totalorder %s25, 0
    %p98 = por %p96, %p97
    %p99 = scmp.ne.s32.totalorder %s85, %s86
    %p100 = scmp.eq.s32.totalorder %s26, 1
    %p101 = por %p99, %p100
    %p103 = scmp.ne.s32.totalorder %s86, %s102
    %p104 = scmp.eq.s32.totalorder %s26, 0
    %p105 = por %p103, %p104
    %s106 = ssub.s32 %s20, %s27
    %p107 = scmp.eq.s32.totalorder %s106, 0
    %s109 = sadd.s32 %s108, 1
    %s110 = scalar_select %p107, %s108, %s109
    %p113 = pneg %p107
    %p114 = scmp.eq.s32.totalorder %s20, 1
    %p115 = por %p113, %p114
    %p116 = scmp.ne.s32.totalorder %s108, %s111
    %p117 = scmp.eq.s32.totalorder %s20, 0
    %p118 = por %p116, %p117
    %p119 = scmp.ne.s32.totalorder %s108, %s111
    %p120 = scmp.eq.s32.totalorder %s25, 1
    %p121 = por %p119, %p120
    %p122 = scmp.ne.s32.totalorder %s111, %s112
    %p123 = scmp.eq.s32.totalorder %s25, 0
    %p124 = por %p122, %p123
    %p125 = scmp.ne.s32.totalorder %s111, %s112
    %p126 = scmp.eq.s32.totalorder %s26, 1
    %p127 = por %p125, %p126
    %p129 = scmp.ne.s32.totalorder %s112, %s128
    %p130 = scmp.eq.s32.totalorder %s26, 0
    %p131 = por %p129, %p130
    %s132 = ssub.s32 %s20, %s27
    %p133 = scmp.eq.s32.totalorder %s132, 0
    %s135 = sadd.s32 %s134, 1
    %s136 = scalar_select %p133, %s134, %s135
    %p139 = pneg %p133
    %p140 = scmp.eq.s32.totalorder %s20, 1
    %p141 = por %p139, %p140
    %p142 = scmp.ne.s32.totalorder %s134, %s137
    %p143 = scmp.eq.s32.totalorder %s20, 0
    %p144 = por %p142, %p143
    %p145 = scmp.ne.s32.totalorder %s134, %s137
    %p146 = scmp.eq.s32.totalorder %s25, 1
    %p147 = por %p145, %p146
    %p148 = scmp.ne.s32.totalorder %s137, %s138
    %p149 = scmp.eq.s32.totalorder %s25, 0
    %p150 = por %p148, %p149
    %p151 = scmp.ne.s32.totalorder %s137, %s138
    %p152 = scmp.eq.s32.totalorder %s26, 1
    %p153 = por %p151, %p152
    %p155 = scmp.ne.s32.totalorder %s138, %s154
    %p156 = scmp.eq.s32.totalorder %s26, 0
    %p157 = por %p155, %p156
    %s158 = ssub.s32 %s20, %s27
    %p159 = scmp.eq.s32.totalorder %s158, 0
    %s161 = sadd.s32 %s160, 1
    %s162 = scalar_select %p159, %s160, %s161
    %p165 = pneg %p159
    %p166 = scmp.eq.s32.totalorder %s20, 1
    %p167 = por %p165, %p166
    %p168 = scmp.ne.s32.totalorder %s160, %s163
    %p169 = scmp.eq.s32.totalorder %s20, 0
    %p170 = por %p168, %p169
    %p171 = scmp.ne.s32.totalorder %s160, %s163
    %p172 = scmp.eq.s32.totalorder %s25, 1
    %p173 = por %p171, %p172
    %p174 = scmp.ne.s32.totalorder %s163, %s164
    %p175 = scmp.eq.s32.totalorder %s25, 0
    %p176 = por %p174, %p175
    %p177 = scmp.ne.s32.totalorder %s163, %s164
    %p178 = scmp.eq.s32.totalorder %s26, 1
    %p179 = por %p177, %p178
    %p181 = scmp.ne.s32.totalorder %s164, %s180
    %p182 = scmp.eq.s32.totalorder %s26, 0
    %p183 = por %p181, %p182
    %s184 = ssub.s32 %s20, %s27
    %p185 = scmp.eq.s32.totalorder %s184, 0
    %s187 = sadd.s32 %s186, 1
    %s188 = scalar_select %p185, %s186, %s187
    %p191 = pneg %p185
    %p192 = scmp.eq.s32.totalorder %s20, 1
    %p193 = por %p191, %p192
    %p194 = scmp.ne.s32.totalorder %s186, %s189
    %p195 = scmp.eq.s32.totalorder %s20, 0
    %p196 = por %p194, %p195
    %p197 = scmp.ne.s32.totalorder %s186, %s189
    %p198 = scmp.eq.s32.totalorder %s25, 1
    %p199 = por %p197, %p198
    %p200 = scmp.ne.s32.totalorder %s189, %s190
    %p201 = scmp.eq.s32.totalorder %s25, 0
    %p202 = por %p200, %p201
    %p203 = scmp.ne.s32.totalorder %s189, %s190
    %p204 = scmp.eq.s32.totalorder %s26, 1
    %p205 = por %p203, %p204
    %p207 = scmp.ne.s32.totalorder %s190, %s206
    %p208 = scmp.eq.s32.totalorder %s26, 0
    %p209 = por %p207, %p208
    %p210 = scmp.le.s32.totalorder 1, %s20
    %p211 = scmp.lt.s32.totalorder %s20, 3
    %p212 = pnand %p210, %p211
    %p213 = pneg %p212
    // Predicated region
    $region9: #{test_loss_forward.1} parent=5 // pred_check
      _
    $region10: #{test_loss_forward.1} parent=5 // pred_check_branch
      %215 = sbr.rel (%p212) target = $region12
    $region11: #{test_loss_forward.1} parent=5 // pred_region
      %s216 = ssub.s32 %s20, 1
    $region12: #{test_loss_forward.1} parent=5 // pred_fallthru
      _
    %p217 = scmp.lt.s32.totalorder %s20, 2
    // Predicated region
    $region13: #{test_loss_forward.1} parent=5 // pred_check
      %p218 = pneg %p217
    $region14: #{test_loss_forward.1} parent=5 // pred_check_branch
      %220 = sbr.rel (%p218) target = $region16
    $region15: #{test_loss_forward.1} parent=5 // pred_region
      // Predicated region
      $region17: #{test_loss_forward.1} parent=15 // pred_check
        %p221 = pneg %p40
      $region18: #{test_loss_forward.1} parent=15 // pred_check_branch
        %223 = sbr.rel (%p221) target = $region20
      $region19: #{test_loss_forward.1} parent=15 // pred_region
        %p224 = scmp.lt.s32.totalorder %s20, 1
        %s225 = scalar_select %p224, %s20, 1
        %s226 = smul.addr %s225, 8
        %s227 = scalar_lea.vmem %s1, %s226
      $region20: #{test_loss_forward.1} parent=15 // pred_fallthru
        _
      // Predicated region
      $region21: #{test_loss_forward.1} parent=15 // pred_check
        %p228 = pneg %p66
      $region22: #{test_loss_forward.1} parent=15 // pred_check_branch
        %230 = sbr.rel (%p228) target = $region24
      $region23: #{test_loss_forward.1} parent=15 // pred_region
        %p231 = scmp.lt.s32.totalorder %s20, 1
        %s232 = scalar_select %p231, %s20, 1
        %s233 = smul.addr %s232, 8
        %s234 = scalar_lea.vmem %s2, %s233
      $region24: #{test_loss_forward.1} parent=15 // pred_fallthru
        _
      // Predicated region
      $region25: #{test_loss_forward.1} parent=15 // pred_check
        %p235 = pneg %p92
      $region26: #{test_loss_forward.1} parent=15 // pred_check_branch
        %237 = sbr.rel (%p235) target = $region28
      $region27: #{test_loss_forward.1} parent=15 // pred_region
        %p238 = scmp.lt.s32.totalorder %s20, 1
        %s239 = scalar_select %p238, %s20, 1
        %s240 = smul.addr %s239, 8
        %s241 = scalar_lea.vmem %s3, %s240
      $region28: #{test_loss_forward.1} parent=15 // pred_fallthru
        _
      // Predicated region
      $region29: #{test_loss_forward.1} parent=15 // pred_check
        %p242 = pneg %p118
      $region30: #{test_loss_forward.1} parent=15 // pred_check_branch
        %244 = sbr.rel (%p242) target = $region32
      $region31: #{test_loss_forward.1} parent=15 // pred_region
        %p245 = scmp.lt.s32.totalorder %s20, 1
        %s246 = scalar_select %p245, %s20, 1
        %s247 = smul.addr %s246, 8
        %s248 = scalar_lea.vmem %s4, %s247
      $region32: #{test_loss_forward.1} parent=15 // pred_fallthru
        _
      // Predicated region
      $region33: #{test_loss_forward.1} parent=15 // pred_check
        %p249 = pneg %p144
      $region34: #{test_loss_forward.1} parent=15 // pred_check_branch
        %251 = sbr.rel (%p249) target = $region36
      $region35: #{test_loss_forward.1} parent=15 // pred_region
        %p252 = scmp.lt.s32.totalorder %s20, 1
        %s253 = scalar_select %p252, %s20, 1
        %s254 = scalar_lea.vmem %s5, %s253
      $region36: #{test_loss_forward.1} parent=15 // pred_fallthru
        _
    $region16: #{test_loss_forward.1} parent=5 // pred_fallthru
      _
    %p255 = scmp.le.s32.totalorder 1, %s20
    %p256 = scmp.lt.s32.totalorder %s20, 3
    %p257 = pnand %p255, %p256
    %p258 = pneg %p257
    // Predicated region
    $region37: #{test_loss_forward.1} parent=5 // pred_check
      _
    $region38: #{test_loss_forward.1} parent=5 // pred_check_branch
      %260 = sbr.rel (%p257) target = $region40
    $region39: #{test_loss_forward.1} parent=5 // pred_region
      %s261 = ssub.s32 %s20, 1
      %p262 = scmp.lt.s32.totalorder %s25, 1
      %s263 = scalar_select %p262, %s25, 1
      %s264 = smul.addr %s263, 8
      %s265 = scalar_lea.vmem %s1, %s264
      %p266 = pneg %p46
      %p267 = pneg %p43
      %p268 = scmp.lt.s32.totalorder %s25, 1
      %s269 = scalar_select %p268, %s25, 1
      %s270 = smul.addr %s269, 8
      %s271 = scalar_lea.vmem %s2, %s270
      %p272 = pneg %p72
      %p273 = pneg %p69
      %p274 = scmp.lt.s32.totalorder %s25, 1
      %s275 = scalar_select %p274, %s25, 1
      %s276 = smul.addr %s275, 8
      %s277 = scalar_lea.vmem %s3, %s276
      %p278 = pneg %p98
      %p279 = pneg %p95
      %p280 = scmp.lt.s32.totalorder %s25, 1
      %s281 = scalar_select %p280, %s25, 1
      %s282 = smul.addr %s281, 8
      %s283 = scalar_lea.vmem %s4, %s282
      %p284 = pneg %p124
      %p285 = pneg %p121
      %p286 = scmp.lt.s32.totalorder %s25, 1
      %s287 = scalar_select %p286, %s25, 1
      %s288 = scalar_lea.vmem %s5, %s287
      %p289 = pneg %p150
      %p290 = pneg %p147
      %p291 = pneg %p176
      %p292 = pneg %p173
      %p293 = scmp.lt.s32.totalorder %s25, 1
      %s294 = scalar_select %p293, %s25, 1
      %s295 = scalar_lea.vmem %s6, %s294
      %p296 = pneg %p202
      %p297 = pneg %p199
      %p298 = scmp.lt.s32.totalorder %s25, 1
      %s299 = scalar_select %p298, %s25, 1
      %s300 = scalar_lea.vmem %s7, %s299
      %p301 = scmp.lt.s32.totalorder %s25, 1
      %s302 = scalar_select %p301, %s25, 1
      %s303 = smul.addr %s302, 8
      %s304 = scalar_lea.vmem %s1, %s303
      %p305 = scmp.lt.s32.totalorder %s25, 1
      %s306 = scalar_select %p305, %s25, 1
      %s307 = smul.addr %s306, 8
      %s308 = scalar_lea.vmem %s2, %s307
      %p309 = scmp.lt.s32.totalorder %s25, 1
      %s310 = scalar_select %p309, %s25, 1
      %s311 = smul.addr %s310, 8
      %s312 = scalar_lea.vmem %s3, %s311
      %p313 = scmp.lt.s32.totalorder %s25, 1
      %s314 = scalar_select %p313, %s25, 1
      %s315 = smul.addr %s314, 8
      %s316 = scalar_lea.vmem %s4, %s315
      %p317 = scmp.lt.s32.totalorder %s25, 1
      %s318 = scalar_select %p317, %s25, 1
      %s319 = scalar_lea.vmem %s5, %s318
      %p320 = scmp.lt.s32.totalorder %s25, 1
      %s321 = scalar_select %p320, %s25, 1
      %s322 = scalar_lea.vmem %s6, %s321
      %p323 = scmp.lt.s32.totalorder %s25, 1
      %s324 = scalar_select %p323, %s25, 1
      %s325 = scalar_lea.vmem %s7, %s324
      %v326 = vld [vmem:[%s304] sm:$0xff]
      %v327 = vld [vmem:[%s308] sm:$0xff]
      %329 = vset.pattern.permute.xlu0 0
      %330 = vperm.xlu0 %329, %v327
      %v331 = vpop.permute.xlu0 %330
      %v333 = vmul.f32 %v326, %v331
      %vm334 = vcmask 523264
      %v335 = vsel %vm334, %v333, 0.0
      %v336 = vrot.slane %v335, 4
      %v337 = vadd.f32 %v335, %v336
      %v338 = vrot.slane %v337, 2
      %v339 = vadd.f32 %v337, %v338
      %v340 = vrot.slane %v339, 1
      %v341 = vadd.f32 %v339, %v340
      %v342 = vmul.f32 %v341, 0.125
      %v343 = vmax.f32 %v342, 0.0
      %v344 = vsel %vm334, %v343, -inf
      %345 = vmax.xlane.f32.xlu0 %v344
      %v346 = vpop.xlane.xlu0 %345
      %v347 = vrcp.pop %v346
      %v348 = vmul.f32 %v343, %v347
      %v349 = vld [vmem:[%s312] sm:$0xff]
      %v350 = vld [vmem:[%s316] sm:$0xff]
      %352 = vset.pattern.permute.xlu0 0
      %353 = vperm.xlu0 %352, %v350
      %v354 = vpop.permute.xlu0 %353
      %v356 = vmul.f32 %v349, %v354
      %v357 = vsel %vm334, %v356, 0.0
      %v358 = vrot.slane %v357, 4
      %v359 = vadd.f32 %v357, %v358
      %v360 = vrot.slane %v359, 2
      %v361 = vadd.f32 %v359, %v360
      %v362 = vrot.slane %v361, 1
      %v363 = vadd.f32 %v361, %v362
      %v364 = vmul.f32 %v363, 0.125
      %v365 = vmax.f32 %v364, 0.0
      %v366 = vsel %vm334, %v365, -inf
      %367 = vmax.xlane.f32.xlu0 %v366
      %v368 = vpop.xlane.xlu0 %367
      %v369 = vrcp.pop %v368
      %v370 = vmul.f32 %v365, %v369
      %v371 = vsub.f32 %v348, %v370
      %v372 = vand.u32 2147483647, %v371
      %vm373 = vcmask 516096
      %v374 = vsel %vm373, %v372, 0.0
      %375 = vadd.xlane.f32.xlu0 %v374
      %v376 = vpop.xlane.xlu0 %375
      %v377 = vrot.slane %v376, 4
      %v378 = vadd.f32 %v376, %v377
      %v379 = vrot.slane %v378, 2
      %v380 = vadd.f32 %v378, %v379
      %v381 = vrot.slane %v380, 1
      %v382 = vadd.f32 %v380, %v381
      %s383 = vtos %v382
      %v384 = vstv %s383
      %v385 = vlog2.pop %v384
      %v386 = vmul.f32 %v385, 0.6931472
      %s387 = vtos %v386
      %v388 = vstv %s387
      %vm389 = vcmask 0
      %390 = vst.msk [vmem:[%s322] sm:$0x1] %vm389, %v388
      %v391 = vld [vmem:[%s319] sm:$0x1]
      %vm392 = vcmask 32768
      %v393 = vsel %vm392, %v391, -inf
      %394 = vmax.xlane.f32.xlu0 %v393
      %v395 = vpop.xlane.xlu0 %394
      %v396 = vsub.f32 %v391, %v395
      %v397 = vmul.f32 %v396, 1.442695
      %v398 = vpow.pop %v397
      %v399 = vsel %vm392, %v398, 0.0
      %400 = vadd.xlane.f32.xlu0 %v399
      %v401 = vpop.xlane.xlu0 %400
      %v402 = vlog2.pop %v401
      %v403 = vmul.f32 %v402, 0.6931472
      %v404 = vsub.f32 %v396, %v403
      %s405 = sld [smem:[#allocation3 + %s25]]
      %v406 = vlaneseq
      %v407 = vand.u32 %v406, 127
      %v408 = vstv %s405
      %vm409 = vcmp.eq.s32.totalorder %v407, %v408
      %v410 = vsel %vm409, %v404, 0.0
      %v411 = vsel %vm392, %v410, 0.0
      %412 = vadd.xlane.f32.xlu0 %v411
      %v413 = vpop.xlane.xlu0 %412
      %v414 = vrot.slane %v413, 4
      %v415 = vadd.f32 %v413, %v414
      %v416 = vrot.slane %v415, 2
      %v417 = vadd.f32 %v415, %v416
      %v418 = vrot.slane %v417, 1
      %v419 = vadd.f32 %v417, %v418
      %s420 = vtos %v419
      %s421 = ssub.f32 0.0, %s420
      %v422 = vstv %s421
      %423 = vst.msk [vmem:[%s325] sm:$0x1] %vm389, %v422
      %p424 = scmp.lt.s32.totalorder %s25, 1
      %s425 = scalar_select %p424, %s25, 1
      %s426 = scalar_lea.vmem %s6, %s425
      %p427 = scmp.lt.s32.totalorder %s25, 1
      %s428 = scalar_select %p427, %s25, 1
      %s429 = scalar_lea.vmem %s7, %s428
      // Predicated region
      $region41: #{test_loss_forward.1} parent=39 // pred_check
        %p430 = pneg %p173
      $region42: #{test_loss_forward.1} parent=39 // pred_check_branch
        %432 = sbr.rel (%p430) target = $region44
      $region43: #{test_loss_forward.1} parent=39 // pred_region
        _
      $region44: #{test_loss_forward.1} parent=39 // pred_fallthru
        _
      // Predicated region
      $region45: #{test_loss_forward.1} parent=39 // pred_check
        %p433 = pneg %p199
      $region46: #{test_loss_forward.1} parent=39 // pred_check_branch
        %435 = sbr.rel (%p433) target = $region48
      $region47: #{test_loss_forward.1} parent=39 // pred_region
        _
      $region48: #{test_loss_forward.1} parent=39 // pred_fallthru
        _
    $region40: #{test_loss_forward.1} parent=5 // pred_fallthru
      _
    %p436 = scmp.le.s32.totalorder 2, %s20
    // Predicated region
    $region49: #{test_loss_forward.1} parent=5 // pred_check
      %p437 = pneg %p436
    $region50: #{test_loss_forward.1} parent=5 // pred_check_branch
      %439 = sbr.rel (%p437) target = $region52
    $region51: #{test_loss_forward.1} parent=5 // pred_region
      %s440 = ssub.s32 %s20, 2
      // Predicated region
      $region53: #{test_loss_forward.1} parent=51 // pred_check
        %p441 = pneg %p179
      $region54: #{test_loss_forward.1} parent=51 // pred_check_branch
        %443 = sbr.rel (%p441) target = $region56
      $region55: #{test_loss_forward.1} parent=51 // pred_region
        %p444 = scmp.lt.s32.totalorder %s26, 1
        %s445 = scalar_select %p444, %s26, 1
        %s446 = scalar_lea.vmem %s6, %s445
      $region56: #{test_loss_forward.1} parent=51 // pred_fallthru
        _
      // Predicated region
      $region57: #{test_loss_forward.1} parent=51 // pred_check
        %p447 = pneg %p205
      $region58: #{test_loss_forward.1} parent=51 // pred_check_branch
        %449 = sbr.rel (%p447) target = $region60
      $region59: #{test_loss_forward.1} parent=51 // pred_region
        %p450 = scmp.lt.s32.totalorder %s26, 1
        %s451 = scalar_select %p450, %s26, 1
        %s452 = scalar_lea.vmem %s7, %s451
      $region60: #{test_loss_forward.1} parent=51 // pred_fallthru
        _
    $region52: #{test_loss_forward.1} parent=5 // pred_fallthru
      _
  $region6: #{test_loss_forward.1} parent=0 // loop_footer
    %s24 = sadd.s32 1, %s20
  $region7: #{test_loss_forward.1} parent=0 // loop_footer_branch
    %19 = sbr.rel target = $region3
  $region8: #{test_loss_forward.1} parent=0 // loop_exit
    _

</llo_original>
